<compile_context>
chip_gen: v5e
topology: v5e:2x2
jax: 0.10.0
libtpu: 0.0.40
codegen_flags: <defaults>
</compile_context>

<pallas_src>
import functools

import jax
import jax.numpy as jnp
from jax import lax
from jax.experimental import pallas as pl
from jax.experimental.pallas import tpu as pltpu

ALPHA = 0.25
GAMMA = 2.0

_LANE = 128
_SUB = 8


def _ceil(a, b):
    return -(-a // b)


def _focal_weight(one_minus_pt, gamma):
    g = float(gamma)
    if g == 2.0:
        return one_minus_pt * one_minus_pt          # single VPU multiply, no pow
    if g == int(g) and g >= 0.0:
        return one_minus_pt ** int(g)               # lax.integer_pow
    return jnp.power(one_minus_pt, g)               # generic fallback (EUP)


def _focal_loss_kernel(x_ref, t_ref, o_ref, *scratch, n_valid, n_classes,
                       tile_n, tile_c, n_row_tiles, n_col_tiles,
                       mask_last_rows, mask_last_cols, alpha, gamma):
    # x_ref: (tile_n, tile_c) logits block (f32 or bf16)
    # t_ref: (tile_n, 1) int32 targets block
    # o_ref: (1, 8, 128) f32 per-row-tile partial-sum block (written at last k)
    i = pl.program_id(0)            # row (batch) tile   -> "parallel"
    k = pl.program_id(1)            # class tile         -> "arbitrary" reduction

    x = x_ref[...]                                      # input dtype
    tgt = t_ref[...]                                     # (tile_n, 1) int32

    col = lax.broadcasted_iota(jnp.int32, x.shape, 1)
    if n_col_tiles > 1:
        col = col + k * tile_c
    if mask_last_cols:
        # Last class tile extends past C: neutralize garbage columns (select).
        x = jnp.where(col < n_classes, x, jnp.asarray(-jnp.inf, x.dtype))

    # Row max and one-hot pick in the *input* dtype: max / compare / select /
    # add-zero are exact, and bf16 packs 2 elems/lane on v6e/v7x.  Only the
    # narrow (tile_n, 1) results are promoted to f32.
    mb = jnp.max(x, axis=-1, keepdims=True).astype(jnp.float32)
    picked = jnp.sum(jnp.where(col == tgt, x, jnp.zeros((), x.dtype)),
                     axis=-1, keepdims=True).astype(jnp.float32)

    # exp / LSE path in f32 (mandatory on v5e, cheap everywhere).
    e = jnp.exp(x.astype(jnp.float32) - mb)
    sb = jnp.sum(e, axis=-1, keepdims=True)              # (tile_n, 1) f32

    def finalize(lse, picked_tot):
        ce = lse - picked_tot                            # CE, reduction='none'
        pt = jnp.exp(-ce)
        fl = (alpha * _focal_weight(1.0 - pt, gamma)) * ce

        def write(v):
            o_ref[...] = jnp.full(o_ref.shape, jnp.sum(v), dtype=o_ref.dtype)

        if not mask_last_rows:
            write(fl)
        else:
            last = n_row_tiles - 1

            @pl.when(i != last)                          # full tiles: no mask work
            def _():
                write(fl)

            @pl.when(i == last)                          # partial tile: select, not mul
            def _():
                row = lax.broadcasted_iota(jnp.int32, fl.shape, 0) + i * tile_n
                write(jnp.where(row < n_valid, fl, 0.0))

    if n_col_tiles == 1:
        # Whole class row in one block: scratch-free fast path.
        finalize(jnp.log(sb) + mb, picked)
    else:
        # Online (flash-style) LSE + running picked logit across class tiles.
        m_sc, l_sc, p_sc = scratch

        @pl.when(k == 0)
        def _():
            m_sc[...] = jnp.full_like(m_sc, -jnp.inf)
            l_sc[...] = jnp.zeros_like(l_sc)
            p_sc[...] = jnp.zeros_like(p_sc)

        m_prev = m_sc[...]
        m_new = jnp.maximum(m_prev, mb)
        l_sc[...] = l_sc[...] * jnp.exp(m_prev - m_new) + sb * jnp.exp(mb - m_new)
        p_sc[...] = p_sc[...] + picked
        m_sc[...] = m_new

        @pl.when(k == n_col_tiles - 1)
        def _():
            finalize(jnp.log(l_sc[...]) + m_sc[...], p_sc[...])


def _choose_tiles(n, c, itemsize, tile_n=None, tile_c=None):
    # Class tiling: keep the full row while it is cheap, otherwise stream
    # 512-wide lane-aligned chunks with the online LSE.
    if tile_c is None:
        tile_c = c if c <= 2048 else 512
    tile_c = int(tile_c)
    if tile_c >= c:
        tile_c = c
    elif tile_c % _LANE != 0:
        tile_c = max(_LANE, (tile_c // _LANE) * _LANE)

    c_pad = _ceil(tile_c, _LANE) * _LANE

    if tile_n is None:
        # ~3 MiB of f32 per logits block (>=~1 MiB needed to reach ~85% of HBM
        # roofline), sized against the lane-padded footprint; then bound rows so
        # 2x double-buffered inputs + ~5 f32 tile-sized temporaries stay well
        # under v7x's 64 MiB VMEM per TensorCore.
        tile_n = (3 * 1024 * 1024) // (c_pad * 4)
        per_row = c_pad * (2 * itemsize + 5 * 4)
        tile_n = min(tile_n, (40 * 1024 * 1024) // per_row)
        if tile_n >= n:
            if n >= 32:
                # at least two row tiles so both v7x TensorCores get work
                tile_n = _ceil(_ceil(n, 2), 16) * 16
            else:
                tile_n = n
        else:
            tile_n = max(16, (tile_n // 16) * 16)
    tile_n = int(tile_n)
    if tile_n >= n:
        tile_n = n
    elif tile_n % 8 != 0:
        tile_n = max(8, (tile_n // 8) * 8)
    return tile_n, tile_c


def focal_loss(inputs, targets, alpha=ALPHA, gamma=GAMMA, tile_n=None, tile_c=None):
    """inputs: (N, C) float32/bfloat16 logits; targets: (N,) integer class ids.

    Feed bf16 logits straight from the producer when possible (halves the
    dominant HBM traffic, especially on v5e); all sensitive math is f32 inside.
    """
    n, c = inputs.shape
    itemsize = jnp.dtype(inputs.dtype).itemsize
    tile_n, tile_c = _choose_tiles(n, c, itemsize, tile_n, tile_c)

    n_row_tiles = _ceil(n, tile_n)
    n_col_tiles = _ceil(c, tile_c)
    mask_last_rows = (n % tile_n) != 0
    mask_last_cols = (c % tile_c) != 0

    # Only the tiny targets array is touched in the wrapper; the logits go to the
    # kernel untouched (no jnp.pad copies of (N, C) data in HBM).
    t = targets.astype(jnp.int32).reshape(n, 1)

    kernel = functools.partial(
        _focal_loss_kernel,
        n_valid=n, n_classes=c, tile_n=tile_n, tile_c=tile_c,
        n_row_tiles=n_row_tiles, n_col_tiles=n_col_tiles,
        mask_last_rows=mask_last_rows, mask_last_cols=mask_last_cols,
        alpha=float(alpha), gamma=float(gamma))

    scratch_shapes = []
    if n_col_tiles > 1:
        scratch_shapes = [pltpu.VMEM((tile_n, 1), jnp.float32)] * 3

    c_pad = _ceil(tile_c, _LANE) * _LANE
    blk_in = tile_n * c_pad * itemsize
    blk_f32 = tile_n * c_pad * 4
    vmem_limit = int(min(48 * 2**20,
                         max(32 * 2**20, 2 * blk_in + 8 * blk_f32 + 4 * 2**20)))

    partials = pl.pallas_call(
        kernel,
        out_shape=jax.ShapeDtypeStruct((n_row_tiles, _SUB, _LANE), jnp.float32),
        grid=(n_row_tiles, n_col_tiles),
        in_specs=[
            pl.BlockSpec((tile_n, tile_c), lambda i, k: (i, k)),
            pl.BlockSpec((tile_n, 1), lambda i, k: (i, 0)),
        ],
        out_specs=pl.BlockSpec((1, _SUB, _LANE), lambda i, k: (i, 0, 0)),
        scratch_shapes=scratch_shapes,
        compiler_params=pltpu.CompilerParams(
            dimension_semantics=("parallel", "arbitrary"),
            vmem_limit_bytes=vmem_limit,
        ),
    )(inputs, t)

    # Every entry of a (1, 8, 128) partial block holds the same per-tile raw sum;
    # reduce all copies densely (no strided [:, 0, 0] gather) and divide once.
    return jnp.sum(partials) / (_SUB * _LANE * float(n))


def focal_loss_ref(inputs, targets, alpha=ALPHA, gamma=GAMMA):
    logits = inputs.astype(jnp.float32)
    logp = jax.nn.log_softmax(logits, axis=-1)
    ce = -jnp.take_along_axis(logp, targets[:, None].astype(jnp.int32), axis=-1)[:, 0]
    pt = jnp.exp(-ce)
    return jnp.mean(alpha * (1.0 - pt) ** gamma * ce)


if __name__ == "__main__":
    key = jax.random.PRNGKey(0)
    k1, k2, k3, k4, k5, k6 = jax.random.split(key, 6)

    # Small case matching the module spec: batch=8, 10 classes, f32 logits.
    N, C = 8, 10
    logits = jax.random.normal(k1, (N, C), dtype=jnp.float32)
    targets = jax.random.randint(k2, (N,), 0, C, dtype=jnp.int32)
    out = jax.block_until_ready(focal_loss(logits, targets))
    ref = focal_loss_ref(logits, targets)
    assert jnp.allclose(out, ref, atol=1e-5, rtol=1e-5), (out, ref)

    # Multi-row-tile path with an unpadded partial last tile + bf16 ingestion.
    N2, C2 = 100, 10
    logits2 = jax.random.normal(k3, (N2, C2), dtype=jnp.float32).astype(jnp.bfloat16)
    targets2 = jax.random.randint(k4, (N2,), 0, C2, dtype=jnp.int32)
    out2 = jax.block_until_ready(focal_loss(logits2, targets2))
    ref2 = focal_loss_ref(logits2, targets2)
    assert jnp.allclose(out2, ref2, atol=1e-4, rtol=1e-4), (out2, ref2)

    # Class-axis tiling (online LSE) with a partial last class block.
    N3, C3 = 100, 640
    logits3 = jax.random.normal(k5, (N3, C3), dtype=jnp.float32)
    targets3 = jax.random.randint(k6, (N3,), 0, C3, dtype=jnp.int32)
    out3 = jax.block_until_ready(focal_loss(logits3, targets3, tile_c=512))
    ref3 = focal_loss_ref(logits3, targets3)
    assert jnp.allclose(out3, ref3, atol=1e-5, rtol=1e-5), (out3, ref3)

    print("KERNEL_OK")
</pallas_src>

<mosaic_0001>
module attributes {stable_mosaic.version = 11 : i64} {
  func.func @_focal_loss_kernel(%arg0: i32, %arg1: i32, %arg2: memref<8x10xf32, #tpu.memory_space<vmem>>, %arg3: memref<8x1xi32, #tpu.memory_space<vmem>>, %arg4: memref<1x8x128xf32, #tpu.memory_space<vmem>>) attributes {dimension_semantics = [#tpu.dimension_semantics<parallel>, #tpu.dimension_semantics<arbitrary>], iteration_bounds = array<i64: 1, 1>, scalar_prefetch = 0 : i64, scratch_operands = 0 : i64, tpu.core_type = #tpu.core_type<tc>, window_params = [{transform_indices = @transform_0, window_bounds = array<i64: 8, 10>}, {transform_indices = @transform_1, window_bounds = array<i64: 8, 1>}, {transform_indices = @transform_2, window_bounds = array<i64: 1, 8, 128>}]} {
    %c0 = arith.constant 0 : index
    %c0_0 = arith.constant 0 : index
    %0 = vector.load %arg2[%c0, %c0_0] : memref<8x10xf32, #tpu.memory_space<vmem>>, vector<8x10xf32>
    %c0_1 = arith.constant 0 : index
    %c0_2 = arith.constant 0 : index
    %1 = vector.load %arg3[%c0_1, %c0_2] : memref<8x1xi32, #tpu.memory_space<vmem>>, vector<8x1xi32>
    %2 = tpu.iota {dimensions = array<i32: 1>} : vector<8x10xi32>
    %cst = arith.constant dense<0xFF800000> : vector<8xf32>
    %3 = vector.multi_reduction <maximumf>, %0, %cst [1] : vector<8x10xf32> to vector<8xf32>
    %4 = vector.shape_cast %3 : vector<8xf32> to vector<8x1xf32>
    %5 = vector.broadcast %1 : vector<8x1xi32> to vector<8x10xi32>
    %6 = arith.cmpi eq, %2, %5 : vector<8x10xi32>
    %cst_3 = arith.constant 0.000000e+00 : f32
    %7 = vector.broadcast %cst_3 : f32 to vector<8x10xf32>
    %8 = arith.select %6, %0, %7 : vector<8x10xi1>, vector<8x10xf32>
    %cst_4 = arith.constant dense<0.000000e+00> : vector<8xf32>
    %9 = vector.multi_reduction <add>, %8, %cst_4 [1] : vector<8x10xf32> to vector<8xf32>
    %10 = vector.shape_cast %9 : vector<8xf32> to vector<8x1xf32>
    %11 = vector.broadcast %4 : vector<8x1xf32> to vector<8x10xf32>
    %12 = arith.subf %0, %11 : vector<8x10xf32>
    %13 = math.exp %12 : vector<8x10xf32>
    %cst_5 = arith.constant dense<0.000000e+00> : vector<8xf32>
    %14 = vector.multi_reduction <add>, %13, %cst_5 [1] : vector<8x10xf32> to vector<8xf32>
    %15 = vector.shape_cast %14 : vector<8xf32> to vector<8x1xf32>
    %16 = math.log %15 : vector<8x1xf32>
    %17 = arith.addf %16, %4 : vector<8x1xf32>
    %18 = arith.subf %17, %10 : vector<8x1xf32>
    %cst_6 = arith.constant 0.000000e+00 : f32
    %19 = vector.broadcast %cst_6 : f32 to vector<8x1xf32>
    %20 = arith.subf %19, %18 : vector<8x1xf32>
    %21 = math.exp %20 : vector<8x1xf32>
    %cst_7 = arith.constant 1.000000e+00 : f32
    %22 = vector.broadcast %cst_7 : f32 to vector<8x1xf32>
    %23 = arith.subf %22, %21 : vector<8x1xf32>
    %24 = arith.mulf %23, %23 : vector<8x1xf32>
    %cst_8 = arith.constant 2.500000e-01 : f32
    %25 = vector.broadcast %cst_8 : f32 to vector<8x1xf32>
    %26 = arith.mulf %25, %24 : vector<8x1xf32>
    %27 = arith.mulf %26, %18 : vector<8x1xf32>
    %28 = vector.shape_cast %27 : vector<8x1xf32> to vector<1x8x1xf32>
    %cst_9 = arith.constant dense<0.000000e+00> : vector<1xf32>
    %29 = vector.multi_reduction <add>, %28, %cst_9 [1, 2] : vector<1x8x1xf32> to vector<1xf32>
    %30 = vector.shape_cast %29 : vector<1xf32> to vector<1x1x1xf32>
    %31 = vector.extract %30[0, 0, 0] : f32 from vector<1x1x1xf32>
    %32 = vector.broadcast %31 : f32 to vector<1x8x128xf32>
    %c0_10 = arith.constant 0 : index
    %c0_11 = arith.constant 0 : index
    %c0_12 = arith.constant 0 : index
    %33 = vector.load %arg4[%c0_10, %c0_11, %c0_12] : memref<1x8x128xf32, #tpu.memory_space<vmem>>, vector<1x8x128xf32>
    tpu.vector_store %arg4[%c0_10, %c0_11, %c0_12], %32 {strides = array<i32>} : memref<1x8x128xf32, #tpu.memory_space<vmem>>, vector<1x8x128xf32>,
    return
  }
  func.func @transform_0(%arg0: i32, %arg1: i32) -> (i32, i32) {
    %c0_i32 = arith.constant 0 : i32
    return %arg0, %arg1 : i32, i32
  }
  func.func @transform_1(%arg0: i32, %arg1: i32) -> (i32, i32) {
    %c0_i32 = arith.constant 0 : i32
    %c0_i32_0 = arith.constant 0 : i32
    return %arg0, %c0_i32 : i32, i32
  }
  func.func @transform_2(%arg0: i32, %arg1: i32) -> (i32, i32, i32) {
    %c0_i32 = arith.constant 0 : i32
    %c0_i32_0 = arith.constant 0 : i32
    %c0_i32_1 = arith.constant 0 : i32
    return %arg0, %c0_i32, %c0_i32_0 : i32, i32, i32
  }
}

</mosaic_0001>

<llo_original>
// kernel: tpu_custom_call.1
$region0: #{tpu_custom_call.1}
  #allocation0 [shape = 'u32[]', space=smem, size = 0x4, offset = 0x4, fixed_abs, tag = 'smem constant byte address 0x4 - core index']
  #allocation1 [shape = 'u32[72,128]{1,0:T(1,128)}', space=vmem, size = 0x9000, scoped, tag = 'internal scratch']
  %s0 = inlined_call_operand.vmem [shape: f32[8,10], index: 0, kind: input, shape index: {}]
  %s1 = inlined_call_operand.vmem [shape: s32[8,1], index: 1, kind: input, shape index: {}]
  %s2 = inlined_call_operand.hbm [shape: f32[1,8,128], index: 2, kind: output, shape index: {}]
  %s3 = sld [smem:[#allocation0]]
  $region18: #{tpu_custom_call.1} parent=0
    _
  %s5 = ssub.s32 1, %s3
  %s6 = scalar_select 0, %s5, %s3
  $region1: #{tpu_custom_call.1} parent=0
    #allocation2 [shape = 'u8[4096]{0}', space=vmem, size = 0x1000, scoped, tag = 'output window, operand 0, single buffered']
    #allocation3 [shape = 's32[1]{0}', space=sflag, size = 0x4, scoped, tag = 'scoped memory for tpu_custom_call.1']
    %7 = vsyncpa [#allocation3], 0
    // Predicated region
    $region2: #{tpu_custom_call.1} parent=1 // pred_check
      _
    $region3: #{tpu_custom_call.1} parent=1 // pred_check_branch
      %9 = sbr.rel (0) target = $region5
    $region4: #{tpu_custom_call.1} parent=1 // pred_region
      _
    $region5: #{tpu_custom_call.1} parent=1 // pred_fallthru
      _
    // Predicated region
    $region6: #{tpu_custom_call.1} parent=1 // pred_check
      _
    $region7: #{tpu_custom_call.1} parent=1 // pred_check_branch
      %11 = sbr.rel (0) target = $region9
    $region8: #{tpu_custom_call.1} parent=1 // pred_region
      _
    $region9: #{tpu_custom_call.1} parent=1 // pred_fallthru
      _
    %v12 = vld [vmem:[%s0] sm:$0xff]
    %v13 = vld [vmem:[%s1] sm:$0xff]
    %v14 = vlaneseq
    %v15 = vand.u32 %v14, 127
    %vm16 = vcmask 80896
    %v17 = vsel %vm16, %v12, -inf
    %18 = vmax.xlane.f32.xlu0 %v17
    %v19 = vpop.xlane.xlu0 %18
    %20 = vset.pattern.permute.xlu0 0
    %21 = vperm.xlu0 %20, %v13
    %v22 = vpop.permute.xlu0 %21
    %vm23 = vcmp.eq.s32.totalorder %v15, %v22
    %v24 = vsel %vm23, %v12, 0.0
    %v25 = vsel %vm16, %v24, 0.0
    %26 = vadd.xlane.f32.xlu0 %v25
    %v27 = vpop.xlane.xlu0 %26
    %v28 = vsub.f32 %v12, %v19
    %v29 = vmul.f32 %v28, 1.442695
    %v30 = vpow.pop %v29
    %v31 = vsel %vm16, %v30, 0.0
    %32 = vadd.xlane.f32.xlu0 %v31
    %v33 = vpop.xlane.xlu0 %32
    %v34 = vlog2.pop %v33
    %v35 = vmul.f32 %v34, 0.6931472
    %v36 = vadd.f32 %v35, %v19
    %v37 = vsub.f32 %v36, %v27
    %v38 = vsub.f32 0.0, %v37
    %v39 = vmul.f32 %v38, 1.442695
    %v40 = vpow.pop %v39
    %v41 = vsub.f32 1.0, %v40
    %v42 = vmul.f32 %v41, %v41
    %v43 = vmul.f32 %v42, 0.25
    %v44 = vmul.f32 %v43, %v37
    %vm45 = vcmask 7168
    %v46 = vsel %vm45, %v44, 0.0
    %47 = vadd.xlane.f32.xlu0 %v46
    %v48 = vpop.xlane.xlu0 %47
    %v49 = vrot.slane %v48, 4
    %v50 = vadd.f32 %v48, %v49
    %v51 = vrot.slane %v50, 2
    %v52 = vadd.f32 %v50, %v51
    %v53 = vrot.slane %v52, 1
    %v54 = vadd.f32 %v52, %v53
    %s55 = vtos %v54
    %v56 = vstv %s55
    %57 = vst [vmem:[#allocation2] sm:$0xff] %v56
    // Predicated region
    $region10: #{tpu_custom_call.1} parent=1 // pred_check
      _
    $region11: #{tpu_custom_call.1} parent=1 // pred_check_branch
      %59 = sbr.rel (0) target = $region13
    $region12: #{tpu_custom_call.1} parent=1 // pred_region
      %61 = vsyncadd [#allocation3], 0
      %s63 = sshll.u32 [#allocation2], 4
      %s64 = int_to_ptr.vmem [resolvable:$true] %s63
      %s65 = sshll.u32 %s2, 4
      %s66 = int_to_ptr.hbm [resolvable:$true] %s65
      %68 = dma.vmem_to_hbm [thread:$0]  %s64, 128, %s66, [#allocation3]
    $region13: #{tpu_custom_call.1} parent=1 // pred_fallthru
      _
    // Predicated region
    $region14: #{tpu_custom_call.1} parent=1 // pred_check
      _
    $region15: #{tpu_custom_call.1} parent=1 // pred_check_branch
      %70 = sbr.rel (0) target = $region17
    $region16: #{tpu_custom_call.1} parent=1 // pred_region
      %72 = dma.done [#allocation3], 128
    $region17: #{tpu_custom_call.1} parent=1 // pred_fallthru
      _
    %73 = vsyncpa [#allocation3], 1

</llo_original>
